<compile_context>
chip_gen: v7x
topology: tpu7x:2x2x1
jax: 0.10.0
libtpu: 0.0.40
codegen_flags: <defaults>
</compile_context>

<pallas_src>
import jax
import jax.numpy as jnp
from jax.experimental import pallas as pl
from jax.experimental.pallas import tpu as pltpu


# ---- Module hyper-parameters (classic PyTorch name-classification sizes) ----
N_LETTERS = 57       # Globals.N_LETTERS
N_HIDDEN = 128       # RNNParams.N_HIDDEN
N_CATEGORIES = 18    # Globals.N_CATEGORIES

_C_PAD = 128                      # categories padded to a lane-dense width
_N_FUSED = N_HIDDEN + _C_PAD      # fused output width [hidden | categories+pad]
_NEG_BIG = -1e30                  # bias placed on pad lanes (masks the softmax)


def _rnn_seq_kernel(x_ref, h0_ref, w_in_ref, w_hid_ref, b_ref,
                    logp_ref, h_ref):
    """One grid step == one RNN time step.

    x_ref    : [1, B, I]       per-step input block (pipelined by BlockSpec)
    h0_ref   : [B, H]          initial hidden state        (VMEM-resident)
    w_in_ref : [I, H + Cp]     fused weight, input rows    (VMEM-resident)
    w_hid_ref: [H, H + Cp]     fused weight, hidden rows   (VMEM-resident)
    b_ref    : [1, H + Cp]     fused bias, pad lanes = -1e30
    logp_ref : [1, B, Cp]      per-step log-softmax output block
    h_ref    : [B, H]          hidden state: constant block index across the
                               grid, so it is the carried state AND the final
                               hidden output (written back to HBM once).
    """
    t = pl.program_id(0)

    @pl.when(t == 0)
    def _():
        h_ref[...] = h0_ref[...]

    x_t = x_ref[0]                       # [B, I]
    h = h_ref[...]                       # [B, H]

    # combined @ [W_h^T | W_o^T] + [b_h | b_o], with the torch.cat replaced by
    # a split-K contraction (no `combined` materialization anywhere), and both
    # linear heads fused into one 256-lane MXU matmul.
    z = (jnp.dot(x_t, w_in_ref[...], preferred_element_type=jnp.float32)
         + jnp.dot(h, w_hid_ref[...], preferred_element_type=jnp.float32)
         + b_ref[...])                   # [B, 256]

    h_new = z[:, :N_HIDDEN]              # [B, 128]
    logits = z[:, N_HIDDEN:]             # [B, 128]; pad lanes hold ~-1e30

    # Numerically-stable log-softmax over the real categories: pad lanes give
    # exp(-1e30 - m) == 0, so they do not perturb max / sum.
    m = jnp.max(logits, axis=1, keepdims=True)
    shifted = logits - m
    lse = jnp.log(jnp.sum(jnp.exp(shifted), axis=1, keepdims=True))
    logp_ref[0] = shifted - lse

    h_ref[...] = h_new                   # carry to the next grid step


def prepare_params(w_hidden, b_hidden, w_output, b_output):
    """Fuse / transpose / lane-pad the PyTorch-layout weights ONCE.

    w_hidden : [H, I+H]   b_hidden : [H]
    w_output : [C, I+H]   b_output : [C]
    Returns (w_in [I, 256], w_hid [H, 256], b_cat [1, 256]).
    """
    w_cat_t = jnp.concatenate([w_hidden, w_output], axis=0).T.astype(jnp.float32)
    w_cat_t = jnp.pad(
        w_cat_t, ((0, 0), (0, _N_FUSED - (N_HIDDEN + N_CATEGORIES))))
    w_in = w_cat_t[:N_LETTERS]           # [I, 256]
    w_hid = w_cat_t[N_LETTERS:]          # [H, 256]
    b_cat = jnp.concatenate([
        b_hidden.astype(jnp.float32),
        b_output.astype(jnp.float32),
        jnp.full((_N_FUSED - N_HIDDEN - N_CATEGORIES,), _NEG_BIG, jnp.float32),
    ]).reshape(1, _N_FUSED)
    return w_in, w_hid, b_cat


@jax.jit
def rnn_sequence_forward(x_seq, h0, w_in, w_hid, b_cat):
    """Run a whole sequence through the RNN in a single pallas_call.

    x_seq : [T, B, N_LETTERS]     h0 : [B, N_HIDDEN]
    Returns (log_probs [T, B, N_CATEGORIES], final_hidden [B, N_HIDDEN]).
    """
    T, B, _ = x_seq.shape
    Bp = ((B + 7) // 8) * 8              # pad batch to full sublanes
    if Bp != B:
        x_seq = jnp.pad(x_seq, ((0, 0), (0, Bp - B), (0, 0)))
        h0 = jnp.pad(h0, ((0, Bp - B), (0, 0)))
    x_seq = x_seq.astype(jnp.float32)
    h0 = h0.astype(jnp.float32)

    logp, h_final = pl.pallas_call(
        _rnn_seq_kernel,
        out_shape=(
            jax.ShapeDtypeStruct((T, Bp, _C_PAD), jnp.float32),
            jax.ShapeDtypeStruct((Bp, N_HIDDEN), jnp.float32),
        ),
        grid_spec=pltpu.PrefetchScalarGridSpec(
            num_scalar_prefetch=0,
            grid=(T,),
            in_specs=[
                pl.BlockSpec((1, Bp, N_LETTERS), lambda t: (t, 0, 0)),  # x_t
                pl.BlockSpec((Bp, N_HIDDEN), lambda t: (0, 0)),         # h0
                pl.BlockSpec((N_LETTERS, _N_FUSED), lambda t: (0, 0)),  # w_in
                pl.BlockSpec((N_HIDDEN, _N_FUSED), lambda t: (0, 0)),   # w_hid
                pl.BlockSpec((1, _N_FUSED), lambda t: (0, 0)),          # bias
            ],
            out_specs=[
                pl.BlockSpec((1, Bp, _C_PAD), lambda t: (t, 0, 0)),     # logp_t
                pl.BlockSpec((Bp, N_HIDDEN), lambda t: (0, 0)),         # h carry
            ],
        ),
        compiler_params=pltpu.CompilerParams(
            dimension_semantics=("arbitrary",)),   # time is a serial carry
    )(x_seq, h0, w_in, w_hid, b_cat)

    return logp[:, :B, :N_CATEGORIES], h_final[:B]


def rnn_forward(input_tensor, hidden, w_in, w_hid, b_cat):
    """Single-step API matching RNN.forward (same kernel, T == 1)."""
    logp, h = rnn_sequence_forward(input_tensor[None], hidden, w_in, w_hid, b_cat)
    return logp[0], h


def init_params(key):
    """Deterministic init matching nn.Linear default U(-1/sqrt(fan_in), ...)."""
    in_features = N_LETTERS + N_HIDDEN
    bound = 1.0 / jnp.sqrt(jnp.float32(in_features))
    k1, k2, k3, k4 = jax.random.split(key, 4)
    w_hidden = jax.random.uniform(k1, (N_HIDDEN, in_features), jnp.float32,
                                  -bound, bound)
    b_hidden = jax.random.uniform(k2, (N_HIDDEN,), jnp.float32, -bound, bound)
    w_output = jax.random.uniform(k3, (N_CATEGORIES, in_features), jnp.float32,
                                  -bound, bound)
    b_output = jax.random.uniform(k4, (N_CATEGORIES,), jnp.float32,
                                  -bound, bound)
    return w_hidden, b_hidden, w_output, b_output


def init_hidden(batch=1):
    """Equivalent of RNN.init_hidden (zeros)."""
    return jnp.zeros((batch, N_HIDDEN), jnp.float32)


if __name__ == "__main__":
    key = jax.random.PRNGKey(0)
    k_params, k_input = jax.random.split(key)

    w_hidden, b_hidden, w_output, b_output = init_params(k_params)
    params = prepare_params(w_hidden, b_hidden, w_output, b_output)  # done once

    batch, seq_len = 2, 8
    x_seq = jax.random.normal(k_input, (seq_len, batch, N_LETTERS), jnp.float32)
    h0 = init_hidden(batch)

    logp_seq, h_final = rnn_sequence_forward(x_seq, h0, *params)
    jax.block_until_ready((logp_seq, h_final))

    # ---- Reference: plain-JAX reproduction of the PyTorch per-step math ----
    hp = jax.lax.Precision.HIGHEST
    h_ref = h0
    ref_outs = []
    for t in range(seq_len):
        combined = jnp.concatenate([x_seq[t], h_ref], axis=1)
        h_ref = jnp.matmul(combined, w_hidden.T, precision=hp) + b_hidden
        logits = jnp.matmul(combined, w_output.T, precision=hp) + b_output
        ref_outs.append(jax.nn.log_softmax(logits, axis=1))
    ref_logp = jnp.stack(ref_outs)

    assert logp_seq.shape == (seq_len, batch, N_CATEGORIES)
    assert h_final.shape == (batch, N_HIDDEN)
    # Loose-ish tolerance: MXU f32 matmul precision may differ slightly from
    # the HIGHEST-precision XLA reference, compounded over 8 recurrent steps.
    assert jnp.allclose(logp_seq, ref_logp, atol=1e-2, rtol=1e-2)
    assert jnp.allclose(h_final, h_ref, atol=1e-2, rtol=1e-2)
    # Exact internal consistency: rows of exp(log-softmax) must sum to 1.
    assert jnp.allclose(jnp.sum(jnp.exp(logp_seq), axis=-1), 1.0, atol=1e-4)

    # Single-step API parity with RNN.forward (same kernel, T=1).
    logp1, h1 = rnn_forward(x_seq[0], h0, *params)
    assert jnp.allclose(logp1, logp_seq[0], atol=1e-5, rtol=1e-5)
    assert logp1.shape == (batch, N_CATEGORIES) and h1.shape == (batch, N_HIDDEN)

    print("KERNEL_OK")
</pallas_src>

<mosaic_0001>
module attributes {stable_mosaic.version = 11 : i64} {
  func.func @_rnn_seq_kernel(%arg0: i32, %arg1: memref<1x8x57xf32, #tpu.memory_space<vmem>>, %arg2: memref<8x128xf32, #tpu.memory_space<vmem>>, %arg3: memref<57x256xf32, #tpu.memory_space<vmem>>, %arg4: memref<128x256xf32, #tpu.memory_space<vmem>>, %arg5: memref<1x256xf32, #tpu.memory_space<vmem>>, %arg6: memref<1x8x128xf32, #tpu.memory_space<vmem>>, %arg7: memref<8x128xf32, #tpu.memory_space<vmem>>) attributes {dimension_semantics = [#tpu.dimension_semantics<arbitrary>], iteration_bounds = array<i64: 8>, scalar_prefetch = 0 : i64, scratch_operands = 0 : i64, tpu.core_type = #tpu.core_type<tc>, window_params = [{transform_indices = @transform_0, window_bounds = array<i64: 1, 8, 57>}, {pipeline_mode = #tpu.pipeline_mode<synchronous>, transform_indices = @transform_1, window_bounds = array<i64: 8, 128>}, {pipeline_mode = #tpu.pipeline_mode<synchronous>, transform_indices = @transform_2, window_bounds = array<i64: 57, 256>}, {pipeline_mode = #tpu.pipeline_mode<synchronous>, transform_indices = @transform_3, window_bounds = array<i64: 128, 256>}, {pipeline_mode = #tpu.pipeline_mode<synchronous>, transform_indices = @transform_4, window_bounds = array<i64: 1, 256>}, {transform_indices = @transform_5, window_bounds = array<i64: 1, 8, 128>}, {pipeline_mode = #tpu.pipeline_mode<synchronous>, transform_indices = @transform_6, window_bounds = array<i64: 8, 128>}]} {
    %c0_i32 = arith.constant 0 : i32
    %0 = arith.cmpi eq, %arg0, %c0_i32 : i32
    %1 = arith.extui %0 : i1 to i32
    %c0_i32_0 = arith.constant 0 : i32
    %2 = arith.cmpi ne, %1, %c0_i32_0 : i32
    scf.if %2 {
      %c0_19 = arith.constant 0 : index
      %c0_20 = arith.constant 0 : index
      %30 = vector.load %arg2[%c0_19, %c0_20] : memref<8x128xf32, #tpu.memory_space<vmem>>, vector<8x128xf32>
      %c0_21 = arith.constant 0 : index
      %c0_22 = arith.constant 0 : index
      %31 = vector.load %arg7[%c0_21, %c0_22] : memref<8x128xf32, #tpu.memory_space<vmem>>, vector<8x128xf32>
      tpu.vector_store %arg7[%c0_21, %c0_22], %30 {strides = array<i32>} : memref<8x128xf32, #tpu.memory_space<vmem>>, vector<8x128xf32>,
    } else {
    }
    %c0 = arith.constant 0 : index
    %c0_1 = arith.constant 0 : index
    %c0_2 = arith.constant 0 : index
    %3 = vector.load %arg1[%c0, %c0_1, %c0_2] : memref<1x8x57xf32, #tpu.memory_space<vmem>>, vector<1x8x57xf32>
    %4 = vector.shape_cast %3 : vector<1x8x57xf32> to vector<8x57xf32>
    %c0_3 = arith.constant 0 : index
    %c0_4 = arith.constant 0 : index
    %5 = vector.load %arg7[%c0_3, %c0_4] : memref<8x128xf32, #tpu.memory_space<vmem>>, vector<8x128xf32>
    %c0_5 = arith.constant 0 : index
    %c0_6 = arith.constant 0 : index
    %6 = vector.load %arg3[%c0_5, %c0_6] : memref<57x256xf32, #tpu.memory_space<vmem>>, vector<57x256xf32>
    %cst = arith.constant dense<0.000000e+00> : vector<8x256xf32>
    %7 = tpu.matmul %4, %6, %cst {dimension_numbers = #tpu.dot_dimension_numbers<[1], [0], [0], [1], [0, 0, 1, 1], [], []>} : vector<8x57xf32>, vector<57x256xf32>, vector<8x256xf32> -> vector<8x256xf32>
    %c0_7 = arith.constant 0 : index
    %c0_8 = arith.constant 0 : index
    %8 = vector.load %arg4[%c0_7, %c0_8] : memref<128x256xf32, #tpu.memory_space<vmem>>, vector<128x256xf32>
    %cst_9 = arith.constant dense<0.000000e+00> : vector<8x256xf32>
    %9 = tpu.matmul %5, %8, %cst_9 {dimension_numbers = #tpu.dot_dimension_numbers<[1], [0], [0], [1], [0, 0, 1, 1], [], []>} : vector<8x128xf32>, vector<128x256xf32>, vector<8x256xf32> -> vector<8x256xf32>
    %10 = arith.addf %7, %9 : vector<8x256xf32>
    %c0_10 = arith.constant 0 : index
    %c0_11 = arith.constant 0 : index
    %11 = vector.load %arg5[%c0_10, %c0_11] : memref<1x256xf32, #tpu.memory_space<vmem>>, vector<1x256xf32>
    %12 = vector.broadcast %11 : vector<1x256xf32> to vector<8x256xf32>
    %13 = arith.addf %10, %12 : vector<8x256xf32>
    %14 = vector.extract_strided_slice %13 {offsets = [0, 0], sizes = [8, 128], strides = [1, 1]} : vector<8x256xf32> to vector<8x128xf32>
    %15 = vector.extract_strided_slice %13 {offsets = [0, 128], sizes = [8, 128], strides = [1, 1]} : vector<8x256xf32> to vector<8x128xf32>
    %cst_12 = arith.constant dense<0xFF800000> : vector<8xf32>
    %16 = vector.multi_reduction <maximumf>, %15, %cst_12 [1] : vector<8x128xf32> to vector<8xf32>
    %17 = vector.shape_cast %16 : vector<8xf32> to vector<8x1xf32>
    %18 = vector.broadcast %17 : vector<8x1xf32> to vector<8x128xf32>
    %19 = arith.subf %15, %18 : vector<8x128xf32>
    %20 = math.exp %19 : vector<8x128xf32>
    %cst_13 = arith.constant dense<0.000000e+00> : vector<8xf32>
    %21 = vector.multi_reduction <add>, %20, %cst_13 [1] : vector<8x128xf32> to vector<8xf32>
    %22 = vector.shape_cast %21 : vector<8xf32> to vector<8x1xf32>
    %23 = math.log %22 : vector<8x1xf32>
    %24 = vector.broadcast %23 : vector<8x1xf32> to vector<8x128xf32>
    %25 = arith.subf %19, %24 : vector<8x128xf32>
    %c0_14 = arith.constant 0 : index
    %c0_15 = arith.constant 0 : index
    %c0_16 = arith.constant 0 : index
    %26 = vector.load %arg6[%c0_14, %c0_15, %c0_16] : memref<1x8x128xf32, #tpu.memory_space<vmem>>, vector<1x8x128xf32>
    %27 = vector.shape_cast %26 : vector<1x8x128xf32> to vector<8x128xf32>
    %28 = vector.shape_cast %25 : vector<8x128xf32> to vector<1x8x128xf32>
    tpu.vector_store %arg6[%c0_14, %c0_15, %c0_16], %28 {strides = array<i32>} : memref<1x8x128xf32, #tpu.memory_space<vmem>>, vector<1x8x128xf32>,
    %c0_17 = arith.constant 0 : index
    %c0_18 = arith.constant 0 : index
    %29 = vector.load %arg7[%c0_17, %c0_18] : memref<8x128xf32, #tpu.memory_space<vmem>>, vector<8x128xf32>
    tpu.vector_store %arg7[%c0_17, %c0_18], %14 {strides = array<i32>} : memref<8x128xf32, #tpu.memory_space<vmem>>, vector<8x128xf32>,
    return
  }
  func.func @transform_0(%arg0: i32) -> (i32, i32, i32) {
    %c0_i32 = arith.constant 0 : i32
    %c0_i32_0 = arith.constant 0 : i32
    %c0_i32_1 = arith.constant 0 : i32
    return %arg0, %c0_i32, %c0_i32_0 : i32, i32, i32
  }
  func.func @transform_1(%arg0: i32) -> (i32, i32) {
    %c0_i32 = arith.constant 0 : i32
    %c0_i32_0 = arith.constant 0 : i32
    %c0_i32_1 = arith.constant 0 : i32
    return %c0_i32, %c0_i32_0 : i32, i32
  }
  func.func @transform_2(%arg0: i32) -> (i32, i32) {
    %c0_i32 = arith.constant 0 : i32
    %c0_i32_0 = arith.constant 0 : i32
    %c0_i32_1 = arith.constant 0 : i32
    return %c0_i32, %c0_i32_0 : i32, i32
  }
  func.func @transform_3(%arg0: i32) -> (i32, i32) {
    %c0_i32 = arith.constant 0 : i32
    %c0_i32_0 = arith.constant 0 : i32
    %c0_i32_1 = arith.constant 0 : i32
    return %c0_i32, %c0_i32_0 : i32, i32
  }
  func.func @transform_4(%arg0: i32) -> (i32, i32) {
    %c0_i32 = arith.constant 0 : i32
    %c0_i32_0 = arith.constant 0 : i32
    %c0_i32_1 = arith.constant 0 : i32
    return %c0_i32, %c0_i32_0 : i32, i32
  }
  func.func @transform_5(%arg0: i32) -> (i32, i32, i32) {
    %c0_i32 = arith.constant 0 : i32
    %c0_i32_0 = arith.constant 0 : i32
    %c0_i32_1 = arith.constant 0 : i32
    return %arg0, %c0_i32, %c0_i32_0 : i32, i32, i32
  }
  func.func @transform_6(%arg0: i32) -> (i32, i32) {
    %c0_i32 = arith.constant 0 : i32
    %c0_i32_0 = arith.constant 0 : i32
    %c0_i32_1 = arith.constant 0 : i32
    return %c0_i32, %c0_i32_0 : i32, i32
  }
}

</mosaic_0001>

<llo_original>
// kernel: rnn_sequence_forward.1
$region0: #{rnn_sequence_forward.1}
  #allocation0 [shape = 'u32[]', space=smem, size = 0x4, offset = 0x4, fixed_abs, tag = 'smem constant byte address 0x4 - core index']
  #allocation1 [shape = 'u32[144,128]{1,0:T(1,128)}', space=vmem, size = 0x12000, scoped, tag = 'internal scratch']
  %s0 = inlined_call_operand.vmem [shape: f32[8,8,57], index: 0, kind: input, shape index: {}]
  %s1 = inlined_call_operand.vmem [shape: f32[8,128], index: 1, kind: input, shape index: {}]
  %s2 = inlined_call_operand.hbm [shape: f32[57,256], index: 2, kind: input, shape index: {}]
  %s3 = inlined_call_operand.hbm [shape: f32[128,256], index: 3, kind: input, shape index: {}]
  %s4 = inlined_call_operand.vmem [shape: f32[1,256], index: 4, kind: input, shape index: {}]
  %s5 = inlined_call_operand.vmem [shape: f32[8,8,128], index: 5, kind: output, shape index: {0}]
  %s6 = inlined_call_operand.vmem [shape: f32[8,128], index: 6, kind: output, shape index: {1}]
  %7 = xla_tuple %s5, %s6
  %s8 = sld [smem:[#allocation0]]
  $region73: #{rnn_sequence_forward.1} parent=0
    _
  %s10 = ssub.s32 1, %s8
  %s11 = scalar_select 0, %s10, %s8
  $region1: #{rnn_sequence_forward.1} parent=0
    #allocation2 [shape = 'u8[65536]{0}', space=vmem, size = 0x10000, scoped, tag = 'input window, operand 2, single buffered']
    #allocation3 [shape = 's32[2]{0}', space=sflag, size = 0x8, scoped, tag = 'scoped memory for rnn_sequence_forward.1']
    #allocation4 [shape = 'u8[131072]{0}', space=vmem, size = 0x20000, scoped, tag = 'input window, operand 3, single buffered']
    #allocation5 [shape = 's32[1]{0}', space=sflag, size = 0x4, scoped, tag = 'scoped memory for rnn_sequence_forward.1']
    %12 = vsyncpa [#allocation3], 0
    %13 = vsyncpa [#allocation5], 0
    loop: start=0, step=1, limit=10
    $region2: #{rnn_sequence_forward.1} parent=1 // loop_pre_header
      _
    $region3: #{rnn_sequence_forward.1} parent=1 // loop_header
      %s15 = sphi 0, %s19
      %p16 = scmp.ge.s32.totalorder %s15, 10
      %s25 = sphi 0, %s27
      %s28 = sphi 0, %s25
      %s29 = sphi 0, %s28
      %s45 = sphi 0, %s29
      %s49 = sphi 0, %s49
      %s51 = sphi 0, %s49
      %s52 = sphi 0, %s51
      %s66 = sphi 0, %s52
      %s70 = sphi 0, %s70
      %s72 = sphi 0, %s70
      %s73 = sphi 0, %s72
      %s87 = sphi 0, %s73
      %s91 = sphi 0, %s91
      %s93 = sphi 0, %s91
      %s94 = sphi 0, %s93
      %s108 = sphi 0, %s94
      %s112 = sphi 0, %s112
      %s114 = sphi 0, %s112
      %s115 = sphi 0, %s114
      %s129 = sphi 0, %s115
      %s135 = sphi 0, %s137
      %s138 = sphi 0, %s135
      %s139 = sphi 0, %s138
      %s155 = sphi 0, %s139
      %s159 = sphi 0, %s159
      %s161 = sphi 0, %s159
      %s162 = sphi 0, %s161
      %s176 = sphi 0, %s162
    $region4: #{rnn_sequence_forward.1} parent=1 // loop_header_branch
      %18 = sbr.rel (%p16) target = $region8
    $region5: #{rnn_sequence_forward.1} parent=1 // loop_body
      %s20 = ssub.s32 %s15, 1
      %s21 = ssub.s32 %s15, 2
      %s22 = sadd.s32 %s15, 1
      %s23 = ssub.s32 %s15, %s22
      %p24 = scmp.eq.s32.totalorder %s23, 0
      %s26 = sadd.s32 %s25, 1
      %s27 = scalar_select %p24, %s25, %s26
      %p30 = pneg %p24
      %p31 = scmp.eq.s32.totalorder %s15, 7
      %p32 = por %p30, %p31
      %p33 = scmp.ne.s32.totalorder %s25, %s28
      %p34 = scmp.eq.s32.totalorder %s15, 0
      %p35 = por %p33, %p34
      %p36 = scmp.ne.s32.totalorder %s25, %s28
      %p37 = scmp.eq.s32.totalorder %s20, 7
      %p38 = por %p36, %p37
      %p39 = scmp.ne.s32.totalorder %s28, %s29
      %p40 = scmp.eq.s32.totalorder %s20, 0
      %p41 = por %p39, %p40
      %p42 = scmp.ne.s32.totalorder %s28, %s29
      %p43 = scmp.eq.s32.totalorder %s21, 7
      %p44 = por %p42, %p43
      %p46 = scmp.ne.s32.totalorder %s29, %s45
      %p47 = scmp.eq.s32.totalorder %s21, 0
      %p48 = por %p46, %p47
      %s50 = sadd.s32 %s49, 1
      %p53 = scmp.eq.s32.totalorder %s15, 7
      %p54 = scmp.ne.s32.totalorder %s49, %s51
      %p55 = scmp.eq.s32.totalorder %s15, 0
      %p56 = por %p54, %p55
      %p57 = scmp.ne.s32.totalorder %s49, %s51
      %p58 = scmp.eq.s32.totalorder %s20, 7
      %p59 = por %p57, %p58
      %p60 = scmp.ne.s32.totalorder %s51, %s52
      %p61 = scmp.eq.s32.totalorder %s20, 0
      %p62 = por %p60, %p61
      %p63 = scmp.ne.s32.totalorder %s51, %s52
      %p64 = scmp.eq.s32.totalorder %s21, 7
      %p65 = por %p63, %p64
      %p67 = scmp.ne.s32.totalorder %s52, %s66
      %p68 = scmp.eq.s32.totalorder %s21, 0
      %p69 = por %p67, %p68
      %s71 = sadd.s32 %s70, 1
      %p74 = scmp.eq.s32.totalorder %s15, 7
      %p75 = scmp.ne.s32.totalorder %s70, %s72
      %p76 = scmp.eq.s32.totalorder %s15, 0
      %p77 = por %p75, %p76
      %p78 = scmp.ne.s32.totalorder %s70, %s72
      %p79 = scmp.eq.s32.totalorder %s20, 7
      %p80 = por %p78, %p79
      %p81 = scmp.ne.s32.totalorder %s72, %s73
      %p82 = scmp.eq.s32.totalorder %s20, 0
      %p83 = por %p81, %p82
      %p84 = scmp.ne.s32.totalorder %s72, %s73
      %p85 = scmp.eq.s32.totalorder %s21, 7
      %p86 = por %p84, %p85
      %p88 = scmp.ne.s32.totalorder %s73, %s87
      %p89 = scmp.eq.s32.totalorder %s21, 0
      %p90 = por %p88, %p89
      %s92 = sadd.s32 %s91, 1
      %p95 = scmp.eq.s32.totalorder %s15, 7
      %p96 = scmp.ne.s32.totalorder %s91, %s93
      %p97 = scmp.eq.s32.totalorder %s15, 0
      %p98 = por %p96, %p97
      %p99 = scmp.ne.s32.totalorder %s91, %s93
      %p100 = scmp.eq.s32.totalorder %s20, 7
      %p101 = por %p99, %p100
      %p102 = scmp.ne.s32.totalorder %s93, %s94
      %p103 = scmp.eq.s32.totalorder %s20, 0
      %p104 = por %p102, %p103
      %p105 = scmp.ne.s32.totalorder %s93, %s94
      %p106 = scmp.eq.s32.totalorder %s21, 7
      %p107 = por %p105, %p106
      %p109 = scmp.ne.s32.totalorder %s94, %s108
      %p110 = scmp.eq.s32.totalorder %s21, 0
      %p111 = por %p109, %p110
      %s113 = sadd.s32 %s112, 1
      %p116 = scmp.eq.s32.totalorder %s15, 7
      %p117 = scmp.ne.s32.totalorder %s112, %s114
      %p118 = scmp.eq.s32.totalorder %s15, 0
      %p119 = por %p117, %p118
      %p120 = scmp.ne.s32.totalorder %s112, %s114
      %p121 = scmp.eq.s32.totalorder %s20, 7
      %p122 = por %p120, %p121
      %p123 = scmp.ne.s32.totalorder %s114, %s115
      %p124 = scmp.eq.s32.totalorder %s20, 0
      %p125 = por %p123, %p124
      %p126 = scmp.ne.s32.totalorder %s114, %s115
      %p127 = scmp.eq.s32.totalorder %s21, 7
      %p128 = por %p126, %p127
      %p130 = scmp.ne.s32.totalorder %s115, %s129
      %p131 = scmp.eq.s32.totalorder %s21, 0
      %p132 = por %p130, %p131
      %s133 = ssub.s32 %s15, %s22
      %p134 = scmp.eq.s32.totalorder %s133, 0
      %s136 = sadd.s32 %s135, 1
      %s137 = scalar_select %p134, %s135, %s136
      %p140 = pneg %p134
      %p141 = scmp.eq.s32.totalorder %s15, 7
      %p142 = por %p140, %p141
      %p143 = scmp.ne.s32.totalorder %s135, %s138
      %p144 = scmp.eq.s32.totalorder %s15, 0
      %p145 = por %p143, %p144
      %p146 = scmp.ne.s32.totalorder %s135, %s138
      %p147 = scmp.eq.s32.totalorder %s20, 7
      %p148 = por %p146, %p147
      %p149 = scmp.ne.s32.totalorder %s138, %s139
      %p150 = scmp.eq.s32.totalorder %s20, 0
      %p151 = por %p149, %p150
      %p152 = scmp.ne.s32.totalorder %s138, %s139
      %p153 = scmp.eq.s32.totalorder %s21, 7
      %p154 = por %p152, %p153
      %p156 = scmp.ne.s32.totalorder %s139, %s155
      %p157 = scmp.eq.s32.totalorder %s21, 0
      %p158 = por %p156, %p157
      %s160 = sadd.s32 %s159, 1
      %p163 = scmp.eq.s32.totalorder %s15, 7
      %p164 = scmp.ne.s32.totalorder %s159, %s161
      %p165 = scmp.eq.s32.totalorder %s15, 0
      %p166 = por %p164, %p165
      %p167 = scmp.ne.s32.totalorder %s159, %s161
      %p168 = scmp.eq.s32.totalorder %s20, 7
      %p169 = por %p167, %p168
      %p170 = scmp.ne.s32.totalorder %s161, %s162
      %p171 = scmp.eq.s32.totalorder %s20, 0
      %p172 = por %p170, %p171
      %p173 = scmp.ne.s32.totalorder %s161, %s162
      %p174 = scmp.eq.s32.totalorder %s21, 7
      %p175 = por %p173, %p174
      %p177 = scmp.ne.s32.totalorder %s162, %s176
      %p178 = scmp.eq.s32.totalorder %s21, 0
      %p179 = por %p177, %p178
      %p180 = scmp.le.s32.totalorder 1, %s15
      %p181 = scmp.lt.s32.totalorder %s15, 9
      %p182 = pnand %p180, %p181
      %p183 = pneg %p182
      // Predicated region
      $region9: #{rnn_sequence_forward.1} parent=5 // pred_check
        _
      $region10: #{rnn_sequence_forward.1} parent=5 // pred_check_branch
        %185 = sbr.rel (%p182) target = $region12
      $region11: #{rnn_sequence_forward.1} parent=5 // pred_region
        %s186 = ssub.s32 %s15, 1
        // Predicated region
        $region13: #{rnn_sequence_forward.1} parent=11 // pred_check
          %p187 = pneg %p62
        $region14: #{rnn_sequence_forward.1} parent=11 // pred_check_branch
          %189 = sbr.rel (%p187) target = $region16
        $region15: #{rnn_sequence_forward.1} parent=11 // pred_region
          _
        $region16: #{rnn_sequence_forward.1} parent=11 // pred_fallthru
          _
        // Predicated region
        $region17: #{rnn_sequence_forward.1} parent=11 // pred_check
          %p190 = pneg %p83
        $region18: #{rnn_sequence_forward.1} parent=11 // pred_check_branch
          %192 = sbr.rel (%p190) target = $region20
        $region19: #{rnn_sequence_forward.1} parent=11 // pred_region
          %s194 = ssub.s32 2048, 2048
          %195 = vsyncadd [#allocation3], %s194
          %s196 = sshll.u32 [#allocation2], 4
          %s197 = int_to_ptr.vmem [resolvable:$true] %s196
          %202 = dma.hbm_to_vmem [thread:$0]  %s2, 2048, %s197, [#allocation3], 256, 256, 16
        $region20: #{rnn_sequence_forward.1} parent=11 // pred_fallthru
          _
        // Predicated region
        $region21: #{rnn_sequence_forward.1} parent=11 // pred_check
          %p203 = pneg %p104
        $region22: #{rnn_sequence_forward.1} parent=11 // pred_check_branch
          %205 = sbr.rel (%p203) target = $region24
        $region23: #{rnn_sequence_forward.1} parent=11 // pred_region
          %s207 = ssub.s32 4096, 4096
          %208 = vsyncadd [#allocation5], %s207
          %s209 = sshll.u32 [#allocation4], 4
          %s210 = int_to_ptr.vmem [resolvable:$true] %s209
          %215 = dma.hbm_to_vmem [thread:$0]  %s3, 4096, %s210, [#allocation5], 256, 256, 16
        $region24: #{rnn_sequence_forward.1} parent=11 // pred_fallthru
          _
        // Predicated region
        $region25: #{rnn_sequence_forward.1} parent=11 // pred_check
          %p216 = pneg %p125
        $region26: #{rnn_sequence_forward.1} parent=11 // pred_check_branch
          %218 = sbr.rel (%p216) target = $region28
        $region27: #{rnn_sequence_forward.1} parent=11 // pred_region
          _
        $region28: #{rnn_sequence_forward.1} parent=11 // pred_fallthru
          _
      $region12: #{rnn_sequence_forward.1} parent=5 // pred_fallthru
        _
      %p219 = scmp.lt.s32.totalorder %s15, 8
      // Predicated region
      $region29: #{rnn_sequence_forward.1} parent=5 // pred_check
        %p220 = pneg %p219
      $region30: #{rnn_sequence_forward.1} parent=5 // pred_check_branch
        %222 = sbr.rel (%p220) target = $region32
      $region31: #{rnn_sequence_forward.1} parent=5 // pred_region
        // Predicated region
        $region33: #{rnn_sequence_forward.1} parent=31 // pred_check
          %p223 = pneg %p35
        $region34: #{rnn_sequence_forward.1} parent=31 // pred_check_branch
          %225 = sbr.rel (%p223) target = $region36
        $region35: #{rnn_sequence_forward.1} parent=31 // pred_region
          %p226 = scmp.lt.s32.totalorder %s15, 7
          %s227 = scalar_select %p226, %s15, 7
          %s228 = smul.addr %s227, 8
          %s229 = scalar_lea.vmem %s0, %s228
        $region36: #{rnn_sequence_forward.1} parent=31 // pred_fallthru
          _
      $region32: #{rnn_sequence_forward.1} parent=5 // pred_fallthru
        _
      %p230 = scmp.le.s32.totalorder 1, %s15
      %p231 = scmp.lt.s32.totalorder %s15, 9
      %p232 = pnand %p230, %p231
      %p233 = pneg %p232
      // Predicated region
      $region37: #{rnn_sequence_forward.1} parent=5 // pred_check
        _
      $region38: #{rnn_sequence_forward.1} parent=5 // pred_check_branch
        %235 = sbr.rel (%p232) target = $region40
      $region39: #{rnn_sequence_forward.1} parent=5 // pred_region
        %s236 = ssub.s32 %s15, 1
        // Predicated region
        $region41: #{rnn_sequence_forward.1} parent=39 // pred_check
          %p237 = pneg %p83
        $region42: #{rnn_sequence_forward.1} parent=39 // pred_check_branch
          %239 = sbr.rel (%p237) target = $region44
        $region43: #{rnn_sequence_forward.1} parent=39 // pred_region
          %240 = dma.done [#allocation3], 2048
        $region44: #{rnn_sequence_forward.1} parent=39 // pred_fallthru
          _
        // Predicated region
        $region45: #{rnn_sequence_forward.1} parent=39 // pred_check
          %p241 = pneg %p104
        $region46: #{rnn_sequence_forward.1} parent=39 // pred_check_branch
          %243 = sbr.rel (%p241) target = $region48
        $region47: #{rnn_sequence_forward.1} parent=39 // pred_region
          %244 = dma.done [#allocation5], 4096
        $region48: #{rnn_sequence_forward.1} parent=39 // pred_fallthru
          _
        %p245 = scmp.lt.s32.totalorder %s20, 7
        %s246 = scalar_select %p245, %s20, 7
        %s247 = smul.addr %s246, 8
        %s248 = scalar_lea.vmem %s0, %s247
        %p249 = pneg %p41
        %p250 = pneg %p38
        %p251 = pneg %p62
        %p252 = pneg %p59
        %p253 = pneg %p83
        %p254 = pneg %p80
        %p255 = pneg %p104
        %p256 = pneg %p101
        %p257 = pneg %p125
        %p258 = pneg %p122
        %p259 = pneg %p151
        %p260 = pneg %p148
        %p261 = scmp.lt.s32.totalorder %s20, 7
        %s262 = scalar_select %p261, %s20, 7
        %s263 = smul.addr %s262, 8
        %s264 = scalar_lea.vmem %s5, %s263
        %p265 = pneg %p172
        %p266 = pneg %p169
        %p267 = scmp.lt.s32.totalorder %s20, 7
        %s268 = scalar_select %p267, %s20, 7
        %s269 = smul.addr %s268, 8
        %s270 = scalar_lea.vmem %s0, %s269
        %p271 = scmp.lt.s32.totalorder %s20, 7
        %s272 = scalar_select %p271, %s20, 7
        %s273 = smul.addr %s272, 8
        %s274 = scalar_lea.vmem %s5, %s273
        %p275 = scmp.eq.s32.totalorder %s20, 0
        // Predicated region
        $region49: #{rnn_sequence_forward.1} parent=39 // pred_check
          %p276 = pneg %p275
        $region50: #{rnn_sequence_forward.1} parent=39 // pred_check_branch
          %278 = sbr.rel (%p276) target = $region52
        $region51: #{rnn_sequence_forward.1} parent=39 // pred_region
          %v279 = vld [vmem:[%s1] sm:$0xff]
          %280 = vst [vmem:[%s6] sm:$0xff] %v279
        $region52: #{rnn_sequence_forward.1} parent=39 // pred_fallthru
          _
        %v281 = vld [vmem:[%s270] sm:$0xff]
        %v282 = vld [vmem:[%s6] sm:$0xff]
        %v283 = vld [vmem:[#allocation2] sm:$0xff]
        %v284 = vld [vmem:[#allocation2 + $0x8] sm:$0xff]
        %v285 = vld [vmem:[#allocation2 + $0x10] sm:$0xff]
        %v286 = vld [vmem:[#allocation2 + $0x18] sm:$0xff]
        %v287 = vld [vmem:[#allocation2 + $0x20] sm:$0xff]
        %v288 = vld [vmem:[#allocation2 + $0x28] sm:$0xff]
        %v289 = vld [vmem:[#allocation2 + $0x30] sm:$0xff]
        %v290 = vld [vmem:[#allocation2 + $0x38] sm:$0xff]
        %v291 = vld [vmem:[#allocation2 + $0x40] sm:$0xff]
        %v292 = vld [vmem:[#allocation2 + $0x48] sm:$0xff]
        %v293 = vld [vmem:[#allocation2 + $0x50] sm:$0xff]
        %v294 = vld [vmem:[#allocation2 + $0x58] sm:$0xff]
        %v295 = vld [vmem:[#allocation2 + $0x60] sm:$0xff]
        %v296 = vld [vmem:[#allocation2 + $0x68] sm:$0xff]
        %v297 = vld [vmem:[#allocation2 + $0x70] sm:$0x1]
        %v298 = vld [vmem:[#allocation2 + $0x78] sm:$0x1]
        %v299 = vld [vmem:[#allocation4] sm:$0xff]
        %v300 = vld [vmem:[#allocation4 + $0x8] sm:$0xff]
        %v301 = vld [vmem:[#allocation4 + $0x10] sm:$0xff]
        %v302 = vld [vmem:[#allocation4 + $0x18] sm:$0xff]
        %v303 = vld [vmem:[#allocation4 + $0x20] sm:$0xff]
        %v304 = vld [vmem:[#allocation4 + $0x28] sm:$0xff]
        %v305 = vld [vmem:[#allocation4 + $0x30] sm:$0xff]
        %v306 = vld [vmem:[#allocation4 + $0x38] sm:$0xff]
        %v307 = vld [vmem:[#allocation4 + $0x40] sm:$0xff]
        %v308 = vld [vmem:[#allocation4 + $0x48] sm:$0xff]
        %v309 = vld [vmem:[#allocation4 + $0x50] sm:$0xff]
        %v310 = vld [vmem:[#allocation4 + $0x58] sm:$0xff]
        %v311 = vld [vmem:[#allocation4 + $0x60] sm:$0xff]
        %v312 = vld [vmem:[#allocation4 + $0x68] sm:$0xff]
        %v313 = vld [vmem:[#allocation4 + $0x70] sm:$0xff]
        %v314 = vld [vmem:[#allocation4 + $0x78] sm:$0xff]
        %v315 = vld [vmem:[#allocation4 + $0x80] sm:$0xff]
        %v316 = vld [vmem:[#allocation4 + $0x88] sm:$0xff]
        %v317 = vld [vmem:[#allocation4 + $0x90] sm:$0xff]
        %v318 = vld [vmem:[#allocation4 + $0x98] sm:$0xff]
        %v319 = vld [vmem:[#allocation4 + $0xa0] sm:$0xff]
        %v320 = vld [vmem:[#allocation4 + $0xa8] sm:$0xff]
        %v321 = vld [vmem:[#allocation4 + $0xb0] sm:$0xff]
        %v322 = vld [vmem:[#allocation4 + $0xb8] sm:$0xff]
        %v323 = vld [vmem:[#allocation4 + $0xc0] sm:$0xff]
        %v324 = vld [vmem:[#allocation4 + $0xc8] sm:$0xff]
        %v325 = vld [vmem:[#allocation4 + $0xd0] sm:$0xff]
        %v326 = vld [vmem:[#allocation4 + $0xd8] sm:$0xff]
        %v327 = vld [vmem:[#allocation4 + $0xe0] sm:$0xff]
        %v328 = vld [vmem:[#allocation4 + $0xe8] sm:$0xff]
        %v329 = vld [vmem:[#allocation4 + $0xf0] sm:$0xff]
        %v330 = vld [vmem:[#allocation4 + $0xf8] sm:$0xff]
        %331 = vmatprep.subr.mxu0 %v300
        %332 = vmatpush1.msra.mxu0 %v299
        %333 = vmatprep.subr.mxu0 %v302
        %334 = vmatpush1.msra.mxu0 %v301
        %335 = vmatprep.subr.mxu0 %v304
        %336 = vmatpush1.msra.mxu0 %v303
        %337 = vmatprep.subr.mxu0 %v306
        %338 = vmatpush1.msra.mxu0 %v305
        %339 = vmatprep.subr.mxu0 %v308
        %340 = vmatpush1.msra.mxu0 %v307
        %341 = vmatprep.subr.mxu0 %v310
        %342 = vmatpush1.msra.mxu0 %v309
        %343 = vmatprep.subr.mxu0 %v312
        %344 = vmatpush1.msra.mxu0 %v311
        %345 = vmatprep.subr.mxu0 %v314
        %346 = vmatpush1.msra.mxu0 %v313
        %347 = vmatprep.subr.mxu0 %v316
        %348 = vmatpush1.msra.mxu0 %v315
        %349 = vmatprep.subr.mxu0 %v318
        %350 = vmatpush1.msra.mxu0 %v317
        %351 = vmatprep.subr.mxu0 %v320
        %352 = vmatpush1.msra.mxu0 %v319
        %353 = vmatprep.subr.mxu0 %v322
        %354 = vmatpush1.msra.mxu0 %v321
        %355 = vmatprep.subr.mxu0 %v324
        %356 = vmatpush1.msra.mxu0 %v323
        %357 = vmatprep.subr.mxu0 %v326
        %358 = vmatpush1.msra.mxu0 %v325
        %359 = vmatprep.subr.mxu0 %v328
        %360 = vmatpush1.msra.mxu0 %v327
        %361 = vmatprep.subr.mxu0 %v330
        %362 = vmatpush1.msra.mxu0 %v329
        %363 = vmatprep.subr.mxu0 0.0
        %364 = vmatpush1.msra.mxu0 0.0
        %365 = vmatprep.subr.mxu0 0.0
        %366 = vmatpush1.msra.mxu0 0.0
        %367 = vmatprep.subr.mxu0 0.0
        %368 = vmatpush1.msra.mxu0 0.0
        %369 = vmatprep.subr.mxu0 0.0
        %370 = vmatpush1.msra.mxu0 0.0
        %371 = vmatprep.subr.mxu0 0.0
        %372 = vmatpush1.msra.mxu0 0.0
        %373 = vmatprep.subr.mxu0 0.0
        %374 = vmatpush1.msra.mxu0 0.0
        %375 = vmatprep.subr.mxu0 0.0
        %376 = vmatpush1.msra.mxu0 0.0
        %377 = vmatprep.subr.mxu0 0.0
        %378 = vmatpush1.msra.mxu0 0.0
        %379 = vmatprep.subr.mxu0 0.0
        %380 = vmatpush1.msra.mxu0 0.0
        %381 = vmatprep.subr.mxu0 0.0
        %382 = vmatpush1.msra.mxu0 0.0
        %383 = vmatprep.subr.mxu0 0.0
        %384 = vmatpush1.msra.mxu0 0.0
        %385 = vmatprep.subr.mxu0 0.0
        %386 = vmatpush1.msra.mxu0 0.0
        %387 = vmatprep.subr.mxu0 0.0
        %388 = vmatpush1.msra.mxu0 0.0
        %389 = vmatprep.subr.mxu0 0.0
        %390 = vmatpush1.msra.mxu0 0.0
        %391 = vmatprep.subr.mxu0 0.0
        %392 = vmatpush1.msra.mxu0 0.0
        %393 = vmatprep.subr.mxu0 0.0
        %394 = vmatpush1.msra.mxu0 0.0
        %395 = vmatprep.mubr.f32.mxu0 0.0
        %396 = vmatmul.mubr.f32.gmra.mrb[0].mxu0 %v282
        %v397 = vpop.f32.mrb[0].mxu0
        %v398 = vadd.f32 0.0, %v397
        %v399 = vpop.f32.mrb[0].mxu0
        %v400 = vadd.f32 0.0, %v399
        %401 = vdwg.mxu0
        %vm402 = vcmask 465920
        %v404 = vsel %vm402, %v281, 0
        %vm406 = vcmask 1040384
        %v408 = vsel %vm406, %v297, 0
        %v411 = vsel %vm406, %v298, 0
        %413 = vmatprep.subr.mxu0 %v284
        %414 = vmatpush1.msra.mxu0 %v283
        %415 = vmatprep.subr.mxu0 %v286
        %416 = vmatpush1.msra.mxu0 %v285
        %417 = vmatprep.subr.mxu0 %v288
        %418 = vmatpush1.msra.mxu0 %v287
        %419 = vmatprep.subr.mxu0 %v290
        %420 = vmatpush1.msra.mxu0 %v289
        %421 = vmatprep.subr.mxu0 %v292
        %422 = vmatpush1.msra.mxu0 %v291
        %423 = vmatprep.subr.mxu0 %v294
        %424 = vmatpush1.msra.mxu0 %v293
        %425 = vmatprep.subr.mxu0 %v296
        %426 = vmatpush1.msra.mxu0 %v295
        %427 = vmatprep.subr.mxu0 %v411
        %428 = vmatpush1.msra.mxu0 %v408
        %429 = vmatprep.subr.mxu0 0.0
        %430 = vmatpush1.msra.mxu0 0.0
        %431 = vmatprep.subr.mxu0 0.0
        %432 = vmatpush1.msra.mxu0 0.0
        %433 = vmatprep.subr.mxu0 0.0
        %434 = vmatpush1.msra.mxu0 0.0
        %435 = vmatprep.subr.mxu0 0.0
        %436 = vmatpush1.msra.mxu0 0.0
        %437 = vmatprep.subr.mxu0 0.0
        %438 = vmatpush1.msra.mxu0 0.0
        %439 = vmatprep.subr.mxu0 0.0
        %440 = vmatpush1.msra.mxu0 0.0
        %441 = vmatprep.subr.mxu0 0.0
        %442 = vmatpush1.msra.mxu0 0.0
        %443 = vmatprep.subr.mxu0 0.0
        %444 = vmatpush1.msra.mxu0 0.0
        %445 = vmatprep.subr.mxu0 0.0
        %446 = vmatpush1.msra.mxu0 0.0
        %447 = vmatprep.subr.mxu0 0.0
        %448 = vmatpush1.msra.mxu0 0.0
        %449 = vmatprep.subr.mxu0 0.0
        %450 = vmatpush1.msra.mxu0 0.0
        %451 = vmatprep.subr.mxu0 0.0
        %452 = vmatpush1.msra.mxu0 0.0
        %453 = vmatprep.subr.mxu0 0.0
        %454 = vmatpush1.msra.mxu0 0.0
        %455 = vmatprep.subr.mxu0 0.0
        %456 = vmatpush1.msra.mxu0 0.0
        %457 = vmatprep.subr.mxu0 0.0
        %458 = vmatpush1.msra.mxu0 0.0
        %459 = vmatprep.subr.mxu0 0.0
        %460 = vmatpush1.msra.mxu0 0.0
        %461 = vmatprep.subr.mxu0 0.0
        %462 = vmatpush1.msra.mxu0 0.0
        %463 = vmatprep.subr.mxu0 0.0
        %464 = vmatpush1.msra.mxu0 0.0
        %465 = vmatprep.subr.mxu0 0.0
        %466 = vmatpush1.msra.mxu0 0.0
        %467 = vmatprep.subr.mxu0 0.0
        %468 = vmatpush1.msra.mxu0 0.0
        %469 = vmatprep.subr.mxu0 0.0
        %470 = vmatpush1.msra.mxu0 0.0
        %471 = vmatprep.subr.mxu0 0.0
        %472 = vmatpush1.msra.mxu0 0.0
        %473 = vmatprep.subr.mxu0 0.0
        %474 = vmatpush1.msra.mxu0 0.0
        %475 = vmatprep.subr.mxu0 0.0
        %476 = vmatpush1.msra.mxu0 0.0
        %477 = vmatprep.mubr.f32.mxu0 0.0
        %478 = vmatmul.mubr.f32.gmra.mrb[0].mxu0 %v404
        %v479 = vpop.f32.mrb[0].mxu0
        %v480 = vadd.f32 %v398, %v479
        %v481 = vpop.f32.mrb[0].mxu0
        %v482 = vadd.f32 %v400, %v481
        %483 = vdwg.mxu0
        %v484 = vld [vmem:[%s4] sm:$0x3]
        %v486 = vlaneseq
        %v487 = vshrl.u32 %v486, 7
        %v488 = vsub.s32 0, %v487
        %v489 = vrot.slane %v484, %v488
        %v490 = vlaneseq
        %v491 = vshrl.u32 %v490, 7
        %v492 = vsub.s32 1, %v491
        %v493 = vrot.slane %v484, %v492
        %v496 = vadd.f32 %v480, %v489
        %v497 = vadd.f32 %v482, %v493
        %498 = vmax.xlane.f32.xlu0 %v497
        %v499 = vpop.xlane.xlu0 %498
        %v500 = vsub.f32 %v497, %v499
        %v501 = vmul.f32 %v500, 1.442695
        %v502 = vpow.pop %v501
        %503 = vadd.xlane.f32.xlu0 %v502
        %v504 = vpop.xlane.xlu0 %503
        %v505 = vlog2.pop %v504
        %v506 = vmul.f32 %v505, 0.6931472
        %v507 = vsub.f32 %v500, %v506
        %508 = vst [vmem:[%s274] sm:$0xff] %v507
        %509 = vst [vmem:[%s6] sm:$0xff] %v496
        %p510 = scmp.lt.s32.totalorder %s20, 7
        %s511 = scalar_select %p510, %s20, 7
        %s512 = smul.addr %s511, 8
        %s513 = scalar_lea.vmem %s5, %s512
        // Predicated region
        $region53: #{rnn_sequence_forward.1} parent=39 // pred_check
          %p514 = pneg %p148
        $region54: #{rnn_sequence_forward.1} parent=39 // pred_check_branch
          %516 = sbr.rel (%p514) target = $region56
        $region55: #{rnn_sequence_forward.1} parent=39 // pred_region
          _
        $region56: #{rnn_sequence_forward.1} parent=39 // pred_fallthru
          _
        // Predicated region
        $region57: #{rnn_sequence_forward.1} parent=39 // pred_check
          %p517 = pneg %p169
        $region58: #{rnn_sequence_forward.1} parent=39 // pred_check_branch
          %519 = sbr.rel (%p517) target = $region60
        $region59: #{rnn_sequence_forward.1} parent=39 // pred_region
          _
        $region60: #{rnn_sequence_forward.1} parent=39 // pred_fallthru
          _
        // Predicated region
        $region61: #{rnn_sequence_forward.1} parent=39 // pred_check
          %p520 = pneg %p169
        $region62: #{rnn_sequence_forward.1} parent=39 // pred_check_branch
          %522 = sbr.rel (%p520) target = $region64
        $region63: #{rnn_sequence_forward.1} parent=39 // pred_region
          _
        $region64: #{rnn_sequence_forward.1} parent=39 // pred_fallthru
          _
      $region40: #{rnn_sequence_forward.1} parent=5 // pred_fallthru
        _
      %p523 = scmp.le.s32.totalorder 2, %s15
      // Predicated region
      $region65: #{rnn_sequence_forward.1} parent=5 // pred_check
        %p524 = pneg %p523
      $region66: #{rnn_sequence_forward.1} parent=5 // pred_check_branch
        %526 = sbr.rel (%p524) target = $region68
      $region67: #{rnn_sequence_forward.1} parent=5 // pred_region
        %s527 = ssub.s32 %s15, 2
        // Predicated region
        $region69: #{rnn_sequence_forward.1} parent=67 // pred_check
          %p528 = pneg %p154
        $region70: #{rnn_sequence_forward.1} parent=67 // pred_check_branch
          %530 = sbr.rel (%p528) target = $region72
        $region71: #{rnn_sequence_forward.1} parent=67 // pred_region
          %p531 = scmp.lt.s32.totalorder %s21, 7
          %s532 = scalar_select %p531, %s21, 7
          %s533 = smul.addr %s532, 8
          %s534 = scalar_lea.vmem %s5, %s533
        $region72: #{rnn_sequence_forward.1} parent=67 // pred_fallthru
          _
      $region68: #{rnn_sequence_forward.1} parent=5 // pred_fallthru
        _
    $region6: #{rnn_sequence_forward.1} parent=1 // loop_footer
      %s19 = sadd.s32 1, %s15
    $region7: #{rnn_sequence_forward.1} parent=1 // loop_footer_branch
      %14 = sbr.rel target = $region3
    $region8: #{rnn_sequence_forward.1} parent=1 // loop_exit
      _
    %535 = vsyncpa [#allocation3], 1
    %s536 = scalar_lea.sflag [#allocation3], 1
    %537 = vsyncpa %s536, 1
    %538 = vsyncpa [#allocation5], 1

</llo_original>
